<compile_context>
chip_gen: v6e
topology: v6e:2x2x1
jax: 0.10.0
libtpu: 0.0.40
codegen_flags: <defaults>
</compile_context>

<pallas_src>
import jax
import jax.numpy as jnp
from jax.experimental import pallas as pl
from jax.experimental.pallas import tpu as pltpu


def _round_up(x, m):
    return (x + m - 1) // m * m


def _vmem_capacity_bytes():
    """Physical VMEM of the attached TPU; conservative fallback if unknown."""
    try:
        cap = getattr(pltpu.get_tpu_info(), "vmem_capacity_bytes", None)
        if cap:
            return int(cap)
    except Exception:
        pass
    return 64 * 1024 * 1024  # v7x per-core size — safe lower bound


def _pick_tn(n_pad, max_tn=512):
    """Largest lane-tile (multiple of 128, <= max_tn) exactly dividing n_pad."""
    q = n_pad // 128
    for d in range(max_tn // 128, 0, -1):
        if q % d == 0:
            return 128 * d
    return 128


def _resident_w_kernel(x_ref, w_ref, o_ref):
    # x_ref: (tm, K)      one M-tile of the flattened (B*D, K) coordinates
    # w_ref: (K, n_pad)   transposed weight, resident in VMEM (not pipelined)
    # o_ref: (tm, tn)     lane-dense output tile (tn exactly divides n_pad)
    tn = o_ref.shape[-1]
    col = pl.multiple_of(pl.program_id(1) * tn, tn)
    o_ref[...] = jnp.dot(
        x_ref[...], w_ref[:, pl.ds(col, tn)],
        preferred_element_type=jnp.float32,
    ).astype(o_ref.dtype)


def _tiled_kernel(x_ref, w_ref, o_ref, acc_ref):
    # Standard (M, N, K) tiled matmul with f32 accumulator; K is the last
    # ("arbitrary") grid axis.
    @pl.when(pl.program_id(2) == 0)
    def _init():
        acc_ref[...] = jnp.zeros_like(acc_ref)

    acc_ref[...] += jnp.dot(
        x_ref[...], w_ref[...], preferred_element_type=jnp.float32
    )

    @pl.when(pl.program_id(2) == pl.num_programs(2) - 1)
    def _finalize():
        o_ref[...] = acc_ref[...].astype(o_ref.dtype)


def decoder_forward(weight, xyz, *, transpose_output=True, compute_dtype=None):
    """weight: (out_dim, in_dim), xyz: (B, in_dim, D).

    Returns (B, out_dim, D) (torch layout) by default, or (B, D, out_dim)
    when transpose_output=False (skips a strided minor-dim copy).
    compute_dtype (e.g. jnp.bfloat16) optionally reduces streamed precision;
    accumulation stays f32.
    """
    out_dim, in_dim = weight.shape
    B, in_dim_x, D = xyz.shape
    assert in_dim_x == in_dim
    out_dtype = jnp.result_type(weight.dtype, xyz.dtype)
    out_itemsize = jnp.dtype(out_dtype).itemsize

    # Lane-dense restructuring: (B*D, K) @ (K, out_dim).
    M, K = B * D, in_dim
    x2d = jnp.transpose(xyz, (0, 2, 1)).reshape(M, K)
    wt = jnp.transpose(weight)  # (K, out_dim)
    if compute_dtype is not None:
        x2d = x2d.astype(compute_dtype)
        wt = wt.astype(compute_dtype)
    itemsize = jnp.dtype(x2d.dtype).itemsize

    # Pad only the (small) weight operand on the output-column axis.
    n_pad = _round_up(out_dim, 128)
    if n_pad != out_dim:
        wt = jnp.pad(wt, ((0, 0), (0, n_pad - out_dim)))

    # Tile sizes: sublane-aligned M tiles up to 1024 rows (ragged last tile is
    # masked by Pallas — no wrapper pad), lane tiles up to 512 wide.
    tm = min(_round_up(M, 8), 1024)
    tn = _pick_tn(n_pad)

    # Megacore: if the grid collapses to a single tile, split one axis so both
    # TensorCores (v7x) get work.
    if pl.cdiv(M, tm) == 1 and tn == n_pad:
        q = n_pad // 128
        if q >= 2:
            for d in range(q // 2, 0, -1):  # largest tile yielding >= 2 N tiles
                if q % d == 0:
                    tn = 128 * d
                    break
        elif M >= 16:
            tm = _round_up(pl.cdiv(M, 2), 8)

    vmem_cap = _vmem_capacity_bytes()
    vmem_limit = min(int(0.8 * vmem_cap), 110 * 1024 * 1024)

    cost = pl.CostEstimate(
        flops=2 * M * K * out_dim,
        transcendentals=0,
        bytes_accessed=(M * K + K * n_pad) * itemsize + M * n_pad * out_itemsize,
    )

    out_shape = jax.ShapeDtypeStruct((M, n_pad), out_dtype)

    resident_w_bytes = K * n_pad * itemsize
    stream_bytes = 2 * (tm * K * itemsize + tm * tn * out_itemsize)

    if resident_w_bytes + stream_bytes <= int(0.7 * vmem_limit):
        # --- Path A: grid-invariant weight resident in VMEM (no redundant
        # double buffer).  Grid order (M slow, N fast) keeps the X block index
        # (i, 0) constant across the N sweep -> each operand read once.
        m_tiles = pl.cdiv(M, tm)
        n_tiles = n_pad // tn
        out2d = pl.pallas_call(
            _resident_w_kernel,
            out_shape=out_shape,
            grid=(m_tiles, n_tiles),
            in_specs=[
                pl.BlockSpec((tm, K), lambda i, j: (i, 0)),
                pl.BlockSpec(memory_space=pltpu.MemorySpace.VMEM),
            ],
            out_specs=pl.BlockSpec((tm, tn), lambda i, j: (i, j)),
            compiler_params=pltpu.CompilerParams(
                dimension_semantics=("parallel", "parallel"),
                vmem_limit_bytes=vmem_limit,
            ),
            cost_estimate=cost,
        )(x2d, wt)
    else:
        # --- Path B: weight too large to keep resident (large in_dim*out_dim,
        # v7x 64 MiB VMEM) -> fully pipelined tiled matmul with a K grid axis
        # and an f32 VMEM accumulator.
        budget = int(0.6 * vmem_limit)

        def _b_bytes(tm_, tk_, tn_):
            return (tm_ * tn_ * 4                                   # accumulator
                    + 2 * (tm_ * tk_ + tk_ * tn_) * itemsize        # X / W buffers
                    + 2 * tm_ * tn_ * out_itemsize)                 # out buffers

        if _b_bytes(tm, K, tn) <= budget:
            tk, k_pad = K, K            # single K tile, no K padding needed
        else:
            tk = 512
            k_pad = _round_up(K, tk)    # zero-pad the contraction (exact K tiles)
            while _b_bytes(tm, tk, tn) > budget and tm > 256:
                tm = max(256, _round_up(tm // 2, 8))
            if _b_bytes(tm, tk, tn) > budget:
                tn = 128

        if k_pad != K:
            x2d = jnp.pad(x2d, ((0, 0), (0, k_pad - K)))
            wt = jnp.pad(wt, ((0, k_pad - K), (0, 0)))

        m_tiles = pl.cdiv(M, tm)
        n_tiles = n_pad // tn
        k_tiles = k_pad // tk

        out2d = pl.pallas_call(
            _tiled_kernel,
            out_shape=out_shape,
            grid_spec=pltpu.PrefetchScalarGridSpec(
                num_scalar_prefetch=0,
                grid=(m_tiles, n_tiles, k_tiles),
                in_specs=[
                    pl.BlockSpec((tm, tk), lambda i, j, k: (i, k)),
                    pl.BlockSpec((tk, tn), lambda i, j, k: (k, j)),
                ],
                out_specs=pl.BlockSpec((tm, tn), lambda i, j, k: (i, j)),
                scratch_shapes=[pltpu.VMEM((tm, tn), jnp.float32)],
            ),
            compiler_params=pltpu.CompilerParams(
                dimension_semantics=("parallel", "parallel", "arbitrary"),
                vmem_limit_bytes=vmem_limit,
            ),
            cost_estimate=cost,
        )(x2d, wt)

    if n_pad != out_dim:
        out2d = out2d[:, :out_dim]
    out = out2d.reshape(B, D, out_dim)
    if transpose_output:
        # Torch layout (B, out_dim, D).  NOTE: strided minor-dim (D-wide lane)
        # copy; pass transpose_output=False if the consumer can take
        # (B, D, out_dim) directly.
        out = jnp.transpose(out, (0, 2, 1))
    return out


if __name__ == "__main__":
    key = jax.random.PRNGKey(0)
    k_w, k_x = jax.random.split(key)

    # Small shapes consistent with the module: in_dim = number of CG beads,
    # out_dim = number of fine-grained atoms, xyz = (batch, in_dim, 3).
    B, in_dim, out_dim, D = 2, 8, 32, 3

    # torch.rand -> uniform [0, 1)
    weight = jax.random.uniform(k_w, (out_dim, in_dim), dtype=jnp.float32)
    xyz = jax.random.normal(k_x, (B, in_dim, D), dtype=jnp.float32)

    out = jax.jit(decoder_forward)(weight, xyz)
    out = jax.block_until_ready(out)

    # Reference check in plain JAX (same math as torch.matmul with expand).
    ref = jnp.einsum("oi,bid->bod", weight, xyz)
    assert out.shape == (B, out_dim, D)
    assert jnp.allclose(out, ref, atol=1e-5, rtol=1e-5)

    print("KERNEL_OK")
</pallas_src>

<mosaic_0001>
module attributes {stable_mosaic.version = 11 : i64} {
  func.func @_resident_w_kernel(%arg0: i32, %arg1: i32, %arg2: memref<8x8xf32, #tpu.memory_space<vmem>>, %arg3: memref<8x128xf32, #tpu.memory_space<vmem>>, %arg4: memref<8x128xf32, #tpu.memory_space<vmem>>) attributes {dimension_semantics = [#tpu.dimension_semantics<parallel>, #tpu.dimension_semantics<parallel>], iteration_bounds = array<i64: 1, 1>, scalar_prefetch = 0 : i64, scratch_operands = 0 : i64, tpu.core_type = #tpu.core_type<tc>, window_params = [{transform_indices = @transform_0, window_bounds = array<i64: 8, 8>}, {pipeline_mode = #tpu.pipeline_mode<synchronous>, transform_indices = @transform_1, window_bounds = array<i64: 8, 128>}, {transform_indices = @transform_2, window_bounds = array<i64: 8, 128>}]} {
    %c128_i32 = arith.constant 128 : i32
    %0 = arith.muli %arg1, %c128_i32 : i32
    %1 = tpu.assume_multiple %0, 128 : i32
    %c0 = arith.constant 0 : index
    %c0_0 = arith.constant 0 : index
    %2 = vector.load %arg2[%c0, %c0_0] : memref<8x8xf32, #tpu.memory_space<vmem>>, vector<8x8xf32>
    %c0_1 = arith.constant 0 : index
    %3 = arith.index_cast %1 : i32 to index
    %4 = vector.load %arg3[%c0_1, %3] : memref<8x128xf32, #tpu.memory_space<vmem>>, vector<8x128xf32>
    %cst = arith.constant dense<0.000000e+00> : vector<8x128xf32>
    %5 = tpu.matmul %2, %4, %cst {dimension_numbers = #tpu.dot_dimension_numbers<[1], [0], [0], [1], [0, 0, 1, 1], [], []>} : vector<8x8xf32>, vector<8x128xf32>, vector<8x128xf32> -> vector<8x128xf32>
    %c0_2 = arith.constant 0 : index
    %c0_3 = arith.constant 0 : index
    %6 = vector.load %arg4[%c0_2, %c0_3] : memref<8x128xf32, #tpu.memory_space<vmem>>, vector<8x128xf32>
    tpu.vector_store %arg4[%c0_2, %c0_3], %5 {strides = array<i32>} : memref<8x128xf32, #tpu.memory_space<vmem>>, vector<8x128xf32>,
    return
  }
  func.func @transform_0(%arg0: i32, %arg1: i32) -> (i32, i32) {
    %c0_i32 = arith.constant 0 : i32
    %c0_i32_0 = arith.constant 0 : i32
    return %arg0, %c0_i32 : i32, i32
  }
  func.func @transform_1(%arg0: i32, %arg1: i32) -> (i32, i32) {
    %c0_i32 = arith.constant 0 : i32
    %c0_i32_0 = arith.constant 0 : i32
    %c0_i32_1 = arith.constant 0 : i32
    return %c0_i32, %c0_i32_0 : i32, i32
  }
  func.func @transform_2(%arg0: i32, %arg1: i32) -> (i32, i32) {
    %c0_i32 = arith.constant 0 : i32
    return %arg0, %arg1 : i32, i32
  }
}

</mosaic_0001>

<llo_original>
// kernel: decoder_forward.1
$region0: #{decoder_forward.1}
  #allocation0 [shape = 'u32[]', space=smem, size = 0x4, offset = 0x4, fixed_abs, tag = 'smem constant byte address 0x4 - core index']
  #allocation1 [shape = 'u32[144,128]{1,0:T(1,128)}', space=vmem, size = 0x12000, scoped, tag = 'internal scratch']
  %s0 = inlined_call_operand.vmem [shape: f32[6,8], index: 0, kind: input, shape index: {}]
  %s1 = inlined_call_operand.vmem [shape: f32[8,128], index: 1, kind: input, shape index: {}]
  %s2 = inlined_call_operand.vmem [shape: f32[6,128], index: 2, kind: output, shape index: {}]
  %s3 = sld [smem:[#allocation0]]
  $region18: #{decoder_forward.1} parent=0
    _
  %s5 = ssub.s32 1, %s3
  %s6 = scalar_select 0, %s5, %s3
  // Predicated region
  $region2: #{decoder_forward.1} parent=0 // pred_check
    _
  $region3: #{decoder_forward.1} parent=0 // pred_check_branch
    %8 = sbr.rel (0) target = $region5
  $region4: #{decoder_forward.1} parent=0 // pred_region
    _
  $region5: #{decoder_forward.1} parent=0 // pred_fallthru
    _
  // Predicated region
  $region6: #{decoder_forward.1} parent=0 // pred_check
    _
  $region7: #{decoder_forward.1} parent=0 // pred_check_branch
    %10 = sbr.rel (0) target = $region9
  $region8: #{decoder_forward.1} parent=0 // pred_region
    _
  $region9: #{decoder_forward.1} parent=0 // pred_fallthru
    _
  %s11 = smul.u32 0, 128
  %v12 = vld [vmem:[%s0] sm:$0xff]
  %s13 = sshra.s32 %s11, 7
  %s14 = sand.u32 %s11, 127
  %s15 = scalar_lea.vmem %s1, %s13
  %v16 = vld [vmem:[%s15] sm:$0xff]
  %vm17 = vcmask 64512
  %v19 = vsel %vm17, %v12, 0
  %21 = vmatprep.subr.mxu0 0.0
  %22 = vmatpush1.msra.mxu0 0.0
  %23 = vmatprep.subr.mxu0 0.0
  %24 = vmatpush1.msra.mxu0 0.0
  %25 = vmatprep.subr.mxu0 0.0
  %26 = vmatpush1.msra.mxu0 0.0
  %27 = vmatprep.subr.mxu0 0.0
  %28 = vmatpush1.msra.mxu0 0.0
  %29 = vmatprep.subr.mxu0 0.0
  %30 = vmatpush1.msra.mxu0 0.0
  %31 = vmatprep.subr.mxu0 0.0
  %32 = vmatpush1.msra.mxu0 0.0
  %33 = vmatprep.subr.mxu0 0.0
  %34 = vmatpush1.msra.mxu0 0.0
  %35 = vmatprep.subr.mxu0 0.0
  %36 = vmatpush1.msra.mxu0 0.0
  %37 = vmatprep.subr.mxu0 0.0
  %38 = vmatpush1.msra.mxu0 0.0
  %39 = vmatprep.subr.mxu0 0.0
  %40 = vmatpush1.msra.mxu0 0.0
  %41 = vmatprep.subr.mxu0 0.0
  %42 = vmatpush1.msra.mxu0 0.0
  %43 = vmatprep.subr.mxu0 0.0
  %44 = vmatpush1.msra.mxu0 0.0
  %45 = vmatprep.subr.mxu0 0.0
  %46 = vmatpush1.msra.mxu0 0.0
  %47 = vmatprep.subr.mxu0 0.0
  %48 = vmatpush1.msra.mxu0 0.0
  %49 = vmatprep.subr.mxu0 0.0
  %50 = vmatpush1.msra.mxu0 0.0
  %51 = vmatprep.subr.mxu0 0.0
  %52 = vmatpush1.msra.mxu0 %v16
  %53 = vmatprep.subr.mxu0 0.0
  %54 = vmatpush2.msra.mxu0 0.0
  %55 = vmatprep.subr.mxu0 0.0
  %56 = vmatpush2.msra.mxu0 0.0
  %57 = vmatprep.subr.mxu0 0.0
  %58 = vmatpush2.msra.mxu0 0.0
  %59 = vmatprep.subr.mxu0 0.0
  %60 = vmatpush2.msra.mxu0 0.0
  %61 = vmatprep.subr.mxu0 0.0
  %62 = vmatpush2.msra.mxu0 0.0
  %63 = vmatprep.subr.mxu0 0.0
  %64 = vmatpush2.msra.mxu0 0.0
  %65 = vmatprep.subr.mxu0 0.0
  %66 = vmatpush2.msra.mxu0 0.0
  %67 = vmatprep.subr.mxu0 0.0
  %68 = vmatpush2.msra.mxu0 0.0
  %69 = vmatprep.subr.mxu0 0.0
  %70 = vmatpush2.msra.mxu0 0.0
  %71 = vmatprep.subr.mxu0 0.0
  %72 = vmatpush2.msra.mxu0 0.0
  %73 = vmatprep.subr.mxu0 0.0
  %74 = vmatpush2.msra.mxu0 0.0
  %75 = vmatprep.subr.mxu0 0.0
  %76 = vmatpush2.msra.mxu0 0.0
  %77 = vmatprep.subr.mxu0 0.0
  %78 = vmatpush2.msra.mxu0 0.0
  %79 = vmatprep.subr.mxu0 0.0
  %80 = vmatpush2.msra.mxu0 0.0
  %81 = vmatprep.subr.mxu0 0.0
  %82 = vmatpush2.msra.mxu0 0.0
  %83 = vmatprep.subr.mxu0 0.0
  %84 = vmatpush2.msra.mxu0 0.0
  %85 = vmatprep.mubr.f32.mxu0 0.0
  %86 = vmatmul.mubr.f32.gmra.mxu0 %v19
  %v87 = vpop.f32.mrf.mxu0
  %v88 = vadd.f32 0.0, %v87
  %v89 = vpop.f32.mrf.mxu0
  %90 = vdwg.mxu0
  %91 = vst [vmem:[%s2] sm:$0xff] %v88
  // Predicated region
  $region10: #{decoder_forward.1} parent=0 // pred_check
    _
  $region11: #{decoder_forward.1} parent=0 // pred_check_branch
    %93 = sbr.rel (0) target = $region13
  $region12: #{decoder_forward.1} parent=0 // pred_region
    _
  $region13: #{decoder_forward.1} parent=0 // pred_fallthru
    _
  // Predicated region
  $region14: #{decoder_forward.1} parent=0 // pred_check
    _
  $region15: #{decoder_forward.1} parent=0 // pred_check_branch
    %95 = sbr.rel (0) target = $region17
  $region16: #{decoder_forward.1} parent=0 // pred_region
    _
  $region17: #{decoder_forward.1} parent=0 // pred_fallthru
    _

</llo_original>
